<compile_context>
chip_gen: v6e
topology: v6e:2x2x1
jax: 0.10.0
libtpu: 0.0.40
codegen_flags: <defaults>
</compile_context>

<pallas_src>
import functools
import math

import jax
import jax.numpy as jnp
from jax.experimental import pallas as pl
from jax.experimental.pallas import tpu as pltpu


def _round_up(a, b):
    return ((a + b - 1) // b) * b


def _fourier_features_kernel(x_ref, w_ref, o_ref, *, half, in_features,
                             use_vpu_fma):
    """One grid step = one batch tile.

    x_ref: [tm, in_features]       (native dtype; cast to f32 here)
    w_ref: [in_features, half]     (f32, already scaled by 2*pi, resident)
    o_ref: [tm, 2*half]            -> [cos(f) | sin(f)]
    """
    x = x_ref[...].astype(jnp.float32)
    w = w_ref[...]
    if use_vpu_fma:
        # K is tiny: a handful of exact-f32 VPU broadcast-FMAs beats the MXU.
        f = x[:, 0:1] * w[0:1, :]
        for k in range(1, in_features):
            f = f + x[:, k:k + 1] * w[k:k + 1, :]
    else:
        f = jnp.dot(x, w,
                    precision=jax.lax.Precision.HIGHEST,
                    preferred_element_type=jnp.float32)
    # cos/sin on the EUP; lane-aligned stores whenever half % 128 == 0.
    o_ref[:, 0:half] = jnp.cos(f).astype(o_ref.dtype)
    o_ref[:, half:] = jnp.sin(f).astype(o_ref.dtype)


def fourier_features(x, weight, *, block_rows=1024, out_dtype=jnp.float32,
                     vpu_fma_max_in_features=16):
    """Pallas wrapper.

    x:      [N, in_features]                 (any float dtype)
    weight: [out_features // 2, in_features] (PyTorch layout)
    returns [N, out_features] = concat([cos(2*pi*x@W.T), sin(2*pi*x@W.T)], -1)
    """
    N, in_f = x.shape
    half, in_w = weight.shape
    assert in_w == in_f, "weight / input feature mismatch"
    out_f = 2 * half

    # Fold the 2*pi scale into the transposed weight (one-time, tiny).
    w_t = (2.0 * math.pi) * weight.astype(jnp.float32).T          # [in_f, half]

    x_bytes = jnp.dtype(x.dtype).itemsize
    o_bytes = jnp.dtype(out_dtype).itemsize
    w_bytes = in_f * half * 4

    # v7x-safe VMEM budget: double-buffered x + out tiles plus the resident W.
    vmem_budget = 24 * 1024 * 1024
    row_bytes = 2 * (in_f * x_bytes + out_f * o_bytes)
    max_rows = max(8, ((vmem_budget - w_bytes) // max(row_bytes, 1)) // 8 * 8)

    tm = min(block_rows, _round_up(N, 8), max_rows)
    tm = max(8, tm - tm % 8)
    # Give the "parallel" axis >= 2 steps when possible (two TCs on v7x).
    if N > 8 and pl.cdiv(N, tm) < 2:
        tm = _round_up(pl.cdiv(N, 2), 8)

    grid = (pl.cdiv(N, tm),)

    cost = pl.CostEstimate(
        flops=2 * N * in_f * half,
        transcendentals=N * out_f,
        bytes_accessed=x_bytes * N * in_f + 4 * in_f * half + o_bytes * N * out_f,
    )

    kernel = functools.partial(
        _fourier_features_kernel,
        half=half,
        in_features=in_f,
        use_vpu_fma=(in_f <= vpu_fma_max_in_features),
    )

    return pl.pallas_call(
        kernel,
        out_shape=jax.ShapeDtypeStruct((N, out_f), out_dtype),
        grid_spec=pltpu.PrefetchScalarGridSpec(
            num_scalar_prefetch=0,
            grid=grid,
            in_specs=[
                pl.BlockSpec((tm, in_f), lambda i: (i, 0)),      # x tile
                pl.BlockSpec((in_f, half), lambda i: (0, 0)),    # scaled W^T
            ],
            out_specs=pl.BlockSpec((tm, out_f), lambda i: (i, 0)),
        ),
        compiler_params=pltpu.CompilerParams(
            dimension_semantics=("parallel",),
            vmem_limit_bytes=32 * 1024 * 1024,
        ),
        cost_estimate=cost,
    )(x, w_t)


def ref_forward(x, weight):
    """Pure-JAX mirror of the PyTorch forward (exact f32 matmul)."""
    f = 2.0 * math.pi * jnp.matmul(
        x.astype(jnp.float32), weight.astype(jnp.float32).T,
        precision=jax.lax.Precision.HIGHEST)
    return jnp.concatenate([jnp.cos(f), jnp.sin(f)], axis=-1)


if __name__ == "__main__":
    # Small shapes consistent with the module (timestep-style features).
    N, in_features, out_features = 2, 4, 32
    std = 1.0

    key = jax.random.PRNGKey(0)
    kx, kw = jax.random.split(key, 2)
    x = jax.random.normal(kx, (N, in_features), jnp.float32)
    weight = std * jax.random.normal(kw, (out_features // 2, in_features),
                                     jnp.float32)

    out = jax.block_until_ready(fourier_features(x, weight))
    ref = jax.block_until_ready(ref_forward(x, weight))

    assert out.shape == (N, out_features) and out.dtype == jnp.float32
    max_err = float(jnp.max(jnp.abs(out - ref)))
    assert jnp.allclose(out, ref, atol=1e-4, rtol=1e-4), f"max_err={max_err}"
    print("KERNEL_OK")
</pallas_src>

<mosaic_0001>
module attributes {stable_mosaic.version = 11 : i64} {
  func.func @_fourier_features_kernel(%arg0: i32, %arg1: memref<8x4xf32, #tpu.memory_space<vmem>>, %arg2: memref<4x16xf32, #tpu.memory_space<vmem>>, %arg3: memref<8x32xf32, #tpu.memory_space<vmem>>) attributes {dimension_semantics = [#tpu.dimension_semantics<parallel>], iteration_bounds = array<i64: 1>, scalar_prefetch = 0 : i64, scratch_operands = 0 : i64, tpu.core_type = #tpu.core_type<tc>, window_params = [{transform_indices = @transform_0, window_bounds = array<i64: 8, 4>}, {pipeline_mode = #tpu.pipeline_mode<synchronous>, transform_indices = @transform_1, window_bounds = array<i64: 4, 16>}, {transform_indices = @transform_2, window_bounds = array<i64: 8, 32>}]} {
    %c0 = arith.constant 0 : index
    %c0_0 = arith.constant 0 : index
    %0 = vector.load %arg1[%c0, %c0_0] : memref<8x4xf32, #tpu.memory_space<vmem>>, vector<8x4xf32>
    %c0_1 = arith.constant 0 : index
    %c0_2 = arith.constant 0 : index
    %1 = vector.load %arg2[%c0_1, %c0_2] : memref<4x16xf32, #tpu.memory_space<vmem>>, vector<4x16xf32>
    %2 = vector.extract_strided_slice %0 {offsets = [0, 0], sizes = [8, 1], strides = [1, 1]} : vector<8x4xf32> to vector<8x1xf32>
    %3 = vector.extract_strided_slice %1 {offsets = [0, 0], sizes = [1, 16], strides = [1, 1]} : vector<4x16xf32> to vector<1x16xf32>
    %4 = vector.broadcast %2 : vector<8x1xf32> to vector<8x16xf32>
    %5 = vector.broadcast %3 : vector<1x16xf32> to vector<8x16xf32>
    %6 = arith.mulf %4, %5 : vector<8x16xf32>
    %7 = vector.extract_strided_slice %0 {offsets = [0, 1], sizes = [8, 1], strides = [1, 1]} : vector<8x4xf32> to vector<8x1xf32>
    %8 = vector.extract_strided_slice %1 {offsets = [1, 0], sizes = [1, 16], strides = [1, 1]} : vector<4x16xf32> to vector<1x16xf32>
    %9 = vector.broadcast %7 : vector<8x1xf32> to vector<8x16xf32>
    %10 = vector.broadcast %8 : vector<1x16xf32> to vector<8x16xf32>
    %11 = arith.mulf %9, %10 : vector<8x16xf32>
    %12 = arith.addf %6, %11 : vector<8x16xf32>
    %13 = vector.extract_strided_slice %0 {offsets = [0, 2], sizes = [8, 1], strides = [1, 1]} : vector<8x4xf32> to vector<8x1xf32>
    %14 = vector.extract_strided_slice %1 {offsets = [2, 0], sizes = [1, 16], strides = [1, 1]} : vector<4x16xf32> to vector<1x16xf32>
    %15 = vector.broadcast %13 : vector<8x1xf32> to vector<8x16xf32>
    %16 = vector.broadcast %14 : vector<1x16xf32> to vector<8x16xf32>
    %17 = arith.mulf %15, %16 : vector<8x16xf32>
    %18 = arith.addf %12, %17 : vector<8x16xf32>
    %19 = vector.extract_strided_slice %0 {offsets = [0, 3], sizes = [8, 1], strides = [1, 1]} : vector<8x4xf32> to vector<8x1xf32>
    %20 = vector.extract_strided_slice %1 {offsets = [3, 0], sizes = [1, 16], strides = [1, 1]} : vector<4x16xf32> to vector<1x16xf32>
    %21 = vector.broadcast %19 : vector<8x1xf32> to vector<8x16xf32>
    %22 = vector.broadcast %20 : vector<1x16xf32> to vector<8x16xf32>
    %23 = arith.mulf %21, %22 : vector<8x16xf32>
    %24 = arith.addf %18, %23 : vector<8x16xf32>
    %25 = math.cos %24 : vector<8x16xf32>
    %c0_3 = arith.constant 0 : index
    %c0_4 = arith.constant 0 : index
    %26 = vector.load %arg3[%c0_3, %c0_4] : memref<8x32xf32, #tpu.memory_space<vmem>>, vector<8x16xf32>
    tpu.vector_store %arg3[%c0_3, %c0_4], %25 {strides = array<i32>} : memref<8x32xf32, #tpu.memory_space<vmem>>, vector<8x16xf32>,
    %27 = math.sin %24 : vector<8x16xf32>
    %c0_5 = arith.constant 0 : index
    %c16 = arith.constant 16 : index
    %28 = vector.load %arg3[%c0_5, %c16] : memref<8x32xf32, #tpu.memory_space<vmem>>, vector<8x16xf32>
    tpu.vector_store %arg3[%c0_5, %c16], %27 {strides = array<i32>} : memref<8x32xf32, #tpu.memory_space<vmem>>, vector<8x16xf32>,
    return
  }
  func.func @transform_0(%arg0: i32) -> (i32, i32) {
    %c0_i32 = arith.constant 0 : i32
    %c0_i32_0 = arith.constant 0 : i32
    return %arg0, %c0_i32 : i32, i32
  }
  func.func @transform_1(%arg0: i32) -> (i32, i32) {
    %c0_i32 = arith.constant 0 : i32
    %c0_i32_0 = arith.constant 0 : i32
    %c0_i32_1 = arith.constant 0 : i32
    return %c0_i32, %c0_i32_0 : i32, i32
  }
  func.func @transform_2(%arg0: i32) -> (i32, i32) {
    %c0_i32 = arith.constant 0 : i32
    %c0_i32_0 = arith.constant 0 : i32
    return %arg0, %c0_i32 : i32, i32
  }
}

</mosaic_0001>

<llo_original>
// kernel: tpu_custom_call.1
$region0: #{tpu_custom_call.1}
  #allocation0 [shape = 'u32[]', space=smem, size = 0x4, offset = 0x4, fixed_abs, tag = 'smem constant byte address 0x4 - core index']
  #allocation1 [shape = 'u32[144,128]{1,0:T(1,128)}', space=vmem, size = 0x12000, scoped, tag = 'internal scratch']
  %s0 = inlined_call_operand.hbm [shape: f32[2,4], index: 0, kind: input, shape index: {}]
  %s1 = inlined_call_operand.hbm [shape: f32[4,16], index: 1, kind: input, shape index: {}]
  %s2 = inlined_call_operand.hbm [shape: f32[2,32], index: 2, kind: output, shape index: {}]
  %s3 = sld [smem:[#allocation0]]
  $region26: #{tpu_custom_call.1} parent=0
    _
  %s5 = ssub.s32 1, %s3
  %s6 = scalar_select 0, %s5, %s3
  $region1: #{tpu_custom_call.1} parent=0
    #allocation2 [shape = 'u8[4096]{0}', space=vmem, size = 0x1000, scoped, tag = 'input window, operand 0, single buffered']
    #allocation3 [shape = 's32[1]{0}', space=sflag, size = 0x4, scoped, tag = 'scoped memory for tpu_custom_call.1']
    #allocation4 [shape = 's32[1]{0}', space=sflag, size = 0x4, scoped, tag = 'scoped memory for tpu_custom_call.1']
    #allocation5 [shape = 'u8[2048]{0}', space=vmem, size = 0x800, scoped, tag = 'input window, operand 1, single buffered']
    #allocation6 [shape = 's32[1]{0}', space=sflag, size = 0x4, scoped, tag = 'scoped memory for tpu_custom_call.1']
    #allocation7 [shape = 'u8[4096]{0}', space=vmem, size = 0x1000, scoped, tag = 'output window, operand 0, single buffered']
    %7 = vsyncpa [#allocation3], 0
    %8 = vsyncpa [#allocation6], 0
    %9 = vsyncpa [#allocation4], 0
    // Predicated region
    $region2: #{tpu_custom_call.1} parent=1 // pred_check
      _
    $region3: #{tpu_custom_call.1} parent=1 // pred_check_branch
      %11 = sbr.rel (0) target = $region5
    $region4: #{tpu_custom_call.1} parent=1 // pred_region
      %s13 = ssub.s32 128, 32
      %14 = vsyncadd [#allocation3], %s13
      %s15 = sshll.u32 [#allocation2], 4
      %s16 = int_to_ptr.vmem [resolvable:$true] %s15
      %21 = dma.hbm_to_vmem [thread:$0]  %s0, 32, %s16, [#allocation3], 32, 32, 2
    $region5: #{tpu_custom_call.1} parent=1 // pred_fallthru
      _
    // Predicated region
    $region6: #{tpu_custom_call.1} parent=1 // pred_check
      _
    $region7: #{tpu_custom_call.1} parent=1 // pred_check_branch
      %23 = sbr.rel (0) target = $region9
    $region8: #{tpu_custom_call.1} parent=1 // pred_region
      %s25 = ssub.s32 64, 64
      %26 = vsyncadd [#allocation6], %s25
      %s28 = sshll.u32 [#allocation5], 4
      %s29 = int_to_ptr.vmem [resolvable:$true] %s28
      %31 = dma.hbm_to_vmem [thread:$0]  %s1, 64, %s29, [#allocation6]
    $region9: #{tpu_custom_call.1} parent=1 // pred_fallthru
      _
    // Predicated region
    $region10: #{tpu_custom_call.1} parent=1 // pred_check
      _
    $region11: #{tpu_custom_call.1} parent=1 // pred_check_branch
      %33 = sbr.rel (0) target = $region13
    $region12: #{tpu_custom_call.1} parent=1 // pred_region
      %34 = dma.done [#allocation3], 128
    $region13: #{tpu_custom_call.1} parent=1 // pred_fallthru
      _
    // Predicated region
    $region14: #{tpu_custom_call.1} parent=1 // pred_check
      _
    $region15: #{tpu_custom_call.1} parent=1 // pred_check_branch
      %36 = sbr.rel (0) target = $region17
    $region16: #{tpu_custom_call.1} parent=1 // pred_region
      %37 = dma.done [#allocation6], 64
    $region17: #{tpu_custom_call.1} parent=1 // pred_fallthru
      _
    %v38 = vld [vmem:[#allocation2] sm:$0xff]
    %v39 = vld [vmem:[#allocation5] sm:$0xf]
    %41 = vset.pattern.permute.xlu0 0
    %42 = vperm.xlu0 %41, %v38
    %v43 = vpop.permute.xlu0 %42
    %v45 = vlaneseq
    %v46 = vshrl.u32 %v45, 7
    %v47 = vsub.s32 0, %v46
    %v48 = vrot.slane %v39, %v47
    %v49 = vmul.f32 %v43, %v48
    %50 = vset.pattern.permute.xlu0 1
    %51 = vperm.xlu0 %50, %v38
    %v52 = vpop.permute.xlu0 %51
    %v54 = vlaneseq
    %v55 = vshrl.u32 %v54, 7
    %v56 = vsub.s32 1, %v55
    %v57 = vrot.slane %v39, %v56
    %v58 = vmul.f32 %v52, %v57
    %v59 = vadd.f32 %v49, %v58
    %60 = vset.pattern.permute.xlu0 2
    %61 = vperm.xlu0 %60, %v38
    %v62 = vpop.permute.xlu0 %61
    %v64 = vlaneseq
    %v65 = vshrl.u32 %v64, 7
    %v66 = vsub.s32 2, %v65
    %v67 = vrot.slane %v39, %v66
    %v68 = vmul.f32 %v62, %v67
    %v69 = vadd.f32 %v59, %v68
    %70 = vset.pattern.permute.xlu0 3
    %71 = vperm.xlu0 %70, %v38
    %v72 = vpop.permute.xlu0 %71
    %v74 = vlaneseq
    %v75 = vshrl.u32 %v74, 7
    %v76 = vsub.s32 3, %v75
    %v77 = vrot.slane %v39, %v76
    %v78 = vmul.f32 %v72, %v77
    %v79 = vadd.f32 %v69, %v78
    %v80 = vand.u32 2147483647, %v79
    %vm81 = vcmp.le.f32.partialorder %v80, 0.7853982
    %vm82 = vcmp.lt.s32.totalorder %v79, 0
    %v83 = vand.u32 %v79, 2139095040
    %v84 = vshrl.u32 %v83, 23
    %v85 = vsub.s32 %v84, 127
    %v86 = vand.u32 2147483647, %v79
    %v87 = vand.u32 %v86, 8388607
    %v88 = vor.u32 %v87, 8388608
    %v89 = vsub.s32 0, %v88
    %v90 = vadd.s32 %v85, 1
    %vm91 = vcmp.gt.s32.totalorder %v90, 0
    %v92 = vsel %vm91, %v90, 0
    %v93 = vshrl.u32 %v92, 5
    %v94 = vand.u32 %v92, 31
    %v95 = vsub.s32 32, %v94
    %v96 = vshrl.u32 683565275, %v95
    %v97 = vshll.u32 683565275, %v94
    %v98 = vshrl.u32 2475754826, %v95
    %v99 = vor.u32 %v97, %v98
    %v100 = vshll.u32 2475754826, %v94
    %v101 = vshrl.u32 2131351028, %v95
    %v102 = vor.u32 %v100, %v101
    %v103 = vshll.u32 2131351028, %v94
    %v104 = vshrl.u32 2102212464, %v95
    %v105 = vor.u32 %v103, %v104
    %v106 = vshll.u32 2102212464, %v94
    %v107 = vshrl.u32 920167782, %v95
    %v108 = vor.u32 %v106, %v107
    %v109 = vshll.u32 920167782, %v94
    %v110 = vshrl.u32 1326507024, %v95
    %v111 = vor.u32 %v109, %v110
    %vm112 = vcmp.lt.s32.totalorder %v93, 1
    %vm113 = vcmp.lt.s32.totalorder %v93, 2
    %vm114 = vcmp.lt.s32.totalorder %v93, 3
    %vm115 = vcmp.lt.s32.totalorder %v93, 4
    %v116 = vsel %vm112, %v96, %v99
    %v117 = vsel %vm115, %v105, 2102212464
    %v118 = vsel %vm114, %v102, %v117
    %v119 = vsel %vm113, %v116, %v118
    %v120 = vsel %vm112, %v99, %v102
    %v121 = vsel %vm115, %v108, 920167782
    %v122 = vsel %vm114, %v105, %v121
    %v123 = vsel %vm113, %v120, %v122
    %v124 = vsel %vm112, %v102, %v105
    %v125 = vsel %vm115, %v111, 1326507024
    %v126 = vsel %vm114, %v108, %v125
    %v127 = vsel %vm113, %v124, %v126
    %v128 = vshll.u32 %v88, 8
    %v129 = vmul.u32.u64.compose %v128, %v127
    %v130 = vextract.low.u32 %v129
    %v131 = vextract.high.u32 %v129
    %v132 = vmul.u32.u64.compose %v128, %v123
    %v133 = vextract.low.u32 %v132
    %v134 = vextract.high.u32 %v132
    %v135 = vmul.u32 %v128, %v119
    %v136 = vadd.s32 %v131, %v133
    %vm137 = vc.u32 %v131, %v133
    %v138 = vadd.s32 %v134, 1
    %v139 = vsel %vm137, %v138, %v134
    %v140 = vadd.s32 %v135, %v139
    %v141 = vadd.s32 %v140, 536870912
    %v142 = vshrl.u32 %v141, 30
    %v143 = vshll.u32 %v142, 30
    %v144 = vsub.s32 %v140, %v143
    %vm145 = vcmp.lt.s32.totalorder %v144, 0
    %v146 = vsub.s32 0, %v144
    %v147 = vsel %vm145, %v146, %v144
    %v148 = vclz %v147
    %v149 = vsub.s32 %v148, 2
    %vm150 = vcmp.gt.s32.totalorder 0, %v149
    %v151 = vsel %vm150, 0, %v149
    %v152 = vsub.s32 32, %v151
    %v153 = vshll.u32 %v144, %v151
    %v154 = vshrl.u32 %v136, %v152
    %v155 = vor.u32 %v153, %v154
    %v156 = vsub.s32 4294967266, %v151
    %v157 = vadd.s32 %v156, 127
    %v158 = vshll.u32 %v157, 23
    %v159 = vor.u32 4788187, %v158
    %v160 = vand.u32 2147483647, %v159
    %v162 = vcvt.s32.f32 %v155
    %v163 = vmul.f32 %v162, %v160
    %v164 = vxor.u32 %v163, 2147483648
    %v165 = vsel %vm82, %v164, %v163
    %v166 = vsub.s32 4, %v142
    %v167 = vsel %vm82, %v166, %v142
    %v168 = vsel %vm81, %v79, %v165
    %v169 = vsel %vm81, 0, %v167
    %v170 = vcosq.f32.pop %v168
    %v171 = vsinq.f32.pop %v168
    %vm172 = vweird.f32 %v79
    %v173 = vand.u32 %v169, 3
    %vm174 = vcmp.lt.s32.totalorder %v173, 2
    %vm175 = vcmp.eq.s32.totalorder %v173, 0
    %v176 = vxor.u32 %v171, 2147483648
    %v177 = vsel %vm175, %v170, %v176
    %vm178 = vcmp.eq.s32.totalorder %v173, 2
    %v179 = vxor.u32 %v170, 2147483648
    %v180 = vsel %vm178, %v179, %v171
    %v181 = vsel %vm174, %v177, %v180
    %v182 = vsel %vm172, nan, %v181
    %vm183 = vcmask 130048
    %184 = vst.msk [vmem:[#allocation7] sm:$0xff] %vm183, %v182
    %v185 = vand.u32 2147483647, %v79
    %vm186 = vcmp.le.f32.partialorder %v185, 0.7853982
    %vm187 = vcmp.lt.s32.totalorder %v79, 0
    %v188 = vand.u32 %v79, 2139095040
    %v189 = vshrl.u32 %v188, 23
    %v190 = vsub.s32 %v189, 127
    %v191 = vand.u32 2147483647, %v79
    %v192 = vand.u32 %v191, 8388607
    %v193 = vor.u32 %v192, 8388608
    %v194 = vsub.s32 0, %v193
    %v195 = vadd.s32 %v190, 1
    %vm196 = vcmp.gt.s32.totalorder %v195, 0
    %v197 = vsel %vm196, %v195, 0
    %v198 = vshrl.u32 %v197, 5
    %v199 = vand.u32 %v197, 31
    %v200 = vsub.s32 32, %v199
    %v201 = vshrl.u32 683565275, %v200
    %v202 = vshll.u32 683565275, %v199
    %v203 = vshrl.u32 2475754826, %v200
    %v204 = vor.u32 %v202, %v203
    %v205 = vshll.u32 2475754826, %v199
    %v206 = vshrl.u32 2131351028, %v200
    %v207 = vor.u32 %v205, %v206
    %v208 = vshll.u32 2131351028, %v199
    %v209 = vshrl.u32 2102212464, %v200
    %v210 = vor.u32 %v208, %v209
    %v211 = vshll.u32 2102212464, %v199
    %v212 = vshrl.u32 920167782, %v200
    %v213 = vor.u32 %v211, %v212
    %v214 = vshll.u32 920167782, %v199
    %v215 = vshrl.u32 1326507024, %v200
    %v216 = vor.u32 %v214, %v215
    %vm217 = vcmp.lt.s32.totalorder %v198, 1
    %vm218 = vcmp.lt.s32.totalorder %v198, 2
    %vm219 = vcmp.lt.s32.totalorder %v198, 3
    %vm220 = vcmp.lt.s32.totalorder %v198, 4
    %v221 = vsel %vm217, %v201, %v204
    %v222 = vsel %vm220, %v210, 2102212464
    %v223 = vsel %vm219, %v207, %v222
    %v224 = vsel %vm218, %v221, %v223
    %v225 = vsel %vm217, %v204, %v207
    %v226 = vsel %vm220, %v213, 920167782
    %v227 = vsel %vm219, %v210, %v226
    %v228 = vsel %vm218, %v225, %v227
    %v229 = vsel %vm217, %v207, %v210
    %v230 = vsel %vm220, %v216, 1326507024
    %v231 = vsel %vm219, %v213, %v230
    %v232 = vsel %vm218, %v229, %v231
    %v233 = vshll.u32 %v193, 8
    %v234 = vmul.u32.u64.compose %v233, %v232
    %v235 = vextract.low.u32 %v234
    %v236 = vextract.high.u32 %v234
    %v237 = vmul.u32.u64.compose %v233, %v228
    %v238 = vextract.low.u32 %v237
    %v239 = vextract.high.u32 %v237
    %v240 = vmul.u32 %v233, %v224
    %v241 = vadd.s32 %v236, %v238
    %vm242 = vc.u32 %v236, %v238
    %v243 = vadd.s32 %v239, 1
    %v244 = vsel %vm242, %v243, %v239
    %v245 = vadd.s32 %v240, %v244
    %v246 = vadd.s32 %v245, 536870912
    %v247 = vshrl.u32 %v246, 30
    %v248 = vshll.u32 %v247, 30
    %v249 = vsub.s32 %v245, %v248
    %vm250 = vcmp.lt.s32.totalorder %v249, 0
    %v251 = vsub.s32 0, %v249
    %v252 = vsel %vm250, %v251, %v249
    %v253 = vclz %v252
    %v254 = vsub.s32 %v253, 2
    %vm255 = vcmp.gt.s32.totalorder 0, %v254
    %v256 = vsel %vm255, 0, %v254
    %v257 = vsub.s32 32, %v256
    %v258 = vshll.u32 %v249, %v256
    %v259 = vshrl.u32 %v241, %v257
    %v260 = vor.u32 %v258, %v259
    %v261 = vsub.s32 4294967266, %v256
    %v262 = vadd.s32 %v261, 127
    %v263 = vshll.u32 %v262, 23
    %v264 = vor.u32 4788187, %v263
    %v265 = vand.u32 2147483647, %v264
    %v267 = vcvt.s32.f32 %v260
    %v268 = vmul.f32 %v267, %v265
    %v269 = vxor.u32 %v268, 2147483648
    %v270 = vsel %vm187, %v269, %v268
    %v271 = vsub.s32 4, %v247
    %v272 = vsel %vm187, %v271, %v247
    %v273 = vsel %vm186, %v79, %v270
    %v274 = vsel %vm186, 0, %v272
    %v275 = vcosq.f32.pop %v273
    %v276 = vsinq.f32.pop %v273
    %vm277 = vweird.f32 %v79
    %v278 = vadd.s32 %v274, 3
    %v279 = vand.u32 %v278, 3
    %vm280 = vcmp.lt.s32.totalorder %v279, 2
    %vm281 = vcmp.eq.s32.totalorder %v279, 0
    %v282 = vxor.u32 %v276, 2147483648
    %v283 = vsel %vm281, %v275, %v282
    %vm284 = vcmp.eq.s32.totalorder %v279, 2
    %v285 = vxor.u32 %v275, 2147483648
    %v286 = vsel %vm284, %v285, %v276
    %v287 = vsel %vm280, %v283, %v286
    %v288 = vsel %vm277, nan, %v287
    %290 = vrot.lane.b32.xlu0 %v288, 16
    %v291 = vpop.permute.xlu0 %290
    %vm293 = vcmask 261248
    %294 = vst.msk [vmem:[#allocation7] sm:$0xff] %vm293, %v291
    // Predicated region
    $region18: #{tpu_custom_call.1} parent=1 // pred_check
      _
    $region19: #{tpu_custom_call.1} parent=1 // pred_check_branch
      %296 = sbr.rel (0) target = $region21
    $region20: #{tpu_custom_call.1} parent=1 // pred_region
      %s298 = ssub.s32 128, 32
      %299 = vsyncadd [#allocation4], %s298
      %s300 = sshll.u32 [#allocation7], 4
      %s301 = int_to_ptr.vmem [resolvable:$true] %s300
      %306 = dma.vmem_to_hbm [thread:$0]  %s301, 32, %s2, [#allocation4], 32, 32, 2
    $region21: #{tpu_custom_call.1} parent=1 // pred_fallthru
      _
    // Predicated region
    $region22: #{tpu_custom_call.1} parent=1 // pred_check
      _
    $region23: #{tpu_custom_call.1} parent=1 // pred_check_branch
      %308 = sbr.rel (0) target = $region25
    $region24: #{tpu_custom_call.1} parent=1 // pred_region
      %309 = dma.done [#allocation4], 128
    $region25: #{tpu_custom_call.1} parent=1 // pred_fallthru
      _
    %310 = vsyncpa [#allocation3], 1
    %311 = vsyncpa [#allocation6], 1
    %312 = vsyncpa [#allocation4], 1

</llo_original>
